<compile_context>
chip_gen: v5e
topology: v5e:2x2
jax: 0.10.0
libtpu: 0.0.40
codegen_flags: <defaults>
</compile_context>

<pallas_src>
import functools

import jax
import jax.numpy as jnp
from jax.experimental import pallas as pl
from jax.experimental.pallas import tpu as pltpu


# ---------------------------------------------------------------------------
# Kernel: fully collapsed dueling-head MLP (single MXU pass).
#   x1a = [edge_features | edge_features_1d | action_behav]      (tile, F+1)
#   y   = x1a @ W_eff + b_eff                                    (tile, OUT_PAD)
#       = [ p_pre | v | a | A0 | 0-pad ]        (a = A0 + act*c_a)
#   out = [ sigmoid(p_pre) | v | a | A0 | ... ]  (lane-dense store)
# ---------------------------------------------------------------------------
def _head_kernel(nc, x_ref, w_ref, b_ref, out_ref):
    y = jnp.dot(x_ref[...], w_ref[...],
                preferred_element_type=jnp.float32) + b_ref[...]
    col = jax.lax.broadcasted_iota(jnp.int32, y.shape, 1)
    out_ref[...] = jnp.where(col < nc, jax.nn.sigmoid(y), y)


# ---------------------------------------------------------------------------
# Wrappers
# ---------------------------------------------------------------------------
def _round_up(x, m):
    return ((x + m - 1) // m) * m


def _cdiv(a, b):
    return -(-a // b)


def _choose_tiles(E, max_tile=4096):
    """Big tiles to amortize per-step overhead, but >=2 grid steps whenever
    possible so v7x's 2 TensorCores both get work (grid axis is "parallel")."""
    e8 = _round_up(max(E, 1), 8)
    if e8 <= 8:
        return e8, e8                                    # grid=(1,)
    if e8 <= 2 * max_tile:
        tile = _round_up(_cdiv(e8, 2), 8)                # exactly 2 steps
        return 2 * tile, tile
    return _round_up(e8, max_tile), max_tile             # >=3 steps


def _pad_rows(x, n):
    if x.shape[0] == n:
        return x
    pad = jnp.zeros((n - x.shape[0],) + x.shape[1:], x.dtype)
    return jnp.concatenate([x, pad], axis=0)


def run_head(x1a, params, *, tile_e):
    E_pad, Fp1 = x1a.shape
    out_pad = params["w_eff"].shape[1]
    grid = (E_pad // tile_e,)
    return pl.pallas_call(
        functools.partial(_head_kernel, params["nc"]),
        grid=grid,
        in_specs=[pl.BlockSpec((tile_e, Fp1), lambda i: (i, 0)),
                  pl.BlockSpec((Fp1, out_pad), lambda i: (0, 0)),
                  pl.BlockSpec((1, out_pad), lambda i: (0, 0))],
        out_specs=pl.BlockSpec((tile_e, out_pad), lambda i: (i, 0)),
        out_shape=jax.ShapeDtypeStruct((E_pad, out_pad), jnp.float32),
        compiler_params=pltpu.CompilerParams(dimension_semantics=("parallel",)),
    )(x1a, params["w_eff"], params["b_eff"])


def init_params(key, n_emb_plus1, n_edge_feat_in, n_edge_classes, hidden=256):
    """Torch-style nn.Linear init: U(-1/sqrt(fan_in), 1/sqrt(fan_in)), then the
    affine two-layer heads are collapsed into one fused (F+1, OUT_PAD) weight."""
    F = n_emb_plus1 + n_edge_feat_in
    Fa = F + 1  # advantage head sees the appended action column

    def lin(k, out_f, in_f):
        kw, kb = jax.random.split(k)
        bound = 1.0 / jnp.sqrt(float(in_f))
        w = jax.random.uniform(kw, (out_f, in_f), jnp.float32, -bound, bound)
        b = jax.random.uniform(kb, (1, out_f), jnp.float32, -bound, bound)
        return w, b

    keys = jax.random.split(key, 6)
    wp1, bp1 = lin(keys[0], hidden, F)
    wp2, bp2 = lin(keys[1], n_edge_classes, hidden)
    wv1, bv1 = lin(keys[2], hidden, F)
    wv2, bv2 = lin(keys[3], n_edge_classes, hidden)
    wa1, ba1 = lin(keys[4], hidden, Fa)
    wa2, ba2 = lin(keys[5], n_edge_classes, hidden)

    NC = n_edge_classes
    wa1x, wa1s = wa1[:, :F], wa1[:, F:]                    # (H, F), (H, 1)

    # Affine collapse of each head (valid: no nonlinearity between the two
    # Linears in the PyTorch module).
    Wp = wp1.T @ wp2.T                                     # (F, NC)
    Wv = wv1.T @ wv2.T
    Wax = wa1x.T @ wa2.T
    ca = wa1s.T @ wa2.T                                    # (1, NC)
    bp = bp1 @ wp2.T + bp2                                 # (1, NC)
    bv = bv1 @ wv2.T + bv2
    ba = ba1 @ wa2.T + ba2

    OUT_PAD = _round_up(4 * NC, 128)                       # lane-dense output
    w_eff = jnp.zeros((F + 1, OUT_PAD), jnp.float32)
    w_eff = w_eff.at[:F, 0:NC].set(Wp)                     # p_pre
    w_eff = w_eff.at[:F, NC:2 * NC].set(Wv)                # v
    w_eff = w_eff.at[:F, 2 * NC:3 * NC].set(Wax)           # a  (action col below)
    w_eff = w_eff.at[:F, 3 * NC:4 * NC].set(Wax)           # A0 (advantage @ s=0)
    w_eff = w_eff.at[F, 2 * NC:3 * NC].set(ca[0])          # action row feeds only 'a'

    b_eff = jnp.zeros((1, OUT_PAD), jnp.float32)
    b_eff = b_eff.at[:, 0:NC].set(bp)
    b_eff = b_eff.at[:, NC:2 * NC].set(bv)
    b_eff = b_eff.at[:, 2 * NC:3 * NC].set(ba)
    b_eff = b_eff.at[:, 3 * NC:4 * NC].set(ba)

    raw = dict(wp1=wp1, bp1=bp1, wp2=wp2, bp2=bp2, wv1=wv1, bv1=bv1,
               wv2=wv2, bv2=bv2, wa1=wa1, ba1=ba1, wa2=wa2, ba2=ba2)
    return dict(w_eff=w_eff, b_eff=b_eff, ca=ca, nc=NC, raw=raw)


def forward(edge_features, edge_features_1d, action_behav, params,
            *, exp_steps, p_sigma, key):
    E = edge_features.shape[0]
    nc = params["nc"]

    # Fold the behaviour action into the single matmul input.
    x1a = jnp.concatenate(
        [edge_features, edge_features_1d, action_behav[:, None]], axis=-1)
    E_pad, tile_e = _choose_tiles(E)
    x1ap = _pad_rows(x1a, E_pad)

    packed = run_head(x1ap, params, tile_e=tile_e)[:E]      # (E, OUT_PAD)
    p = packed[:, 0:nc]
    v = packed[:, nc:2 * nc]
    a = packed[:, 2 * nc:3 * nc]
    a0 = packed[:, 3 * nc:4 * nc]

    # TruncNorm(loc=p, scale=p_sigma, a=0, b=1) sampling (glue).
    loc = p[:, 0]
    lower = (0.0 - loc) / p_sigma
    upper = (1.0 - loc) / p_sigma
    z = jax.random.truncated_normal(key, lower, upper,
                                    (exp_steps + 1, E), jnp.float32)
    samples = loc[None, :] + p_sigma * z                    # (K+1, E)
    mean_s = jnp.mean(samples[:exp_steps], axis=0)          # (E,)
    s_last = samples[exp_steps]                             # returned sample

    # Dueling combine in plain JAX (tiny elementwise; XLA fuses it).
    # Affine head => exp_adv = mean_k out_a2(out_a1([x1, s_k])) = A0 + mean(s)*c_a.
    ca = params["ca"]                                       # (1, NC)
    exp_adv = a0 + mean_s[:, None] * ca
    a_prime = a0 + s_last[:, None] * ca
    q = v + a - exp_adv
    q_prime = v + a_prime - exp_adv
    return p[:, 0], q[:, 0], v[:, 0], a[:, 0], s_last, q_prime[:, 0]


if __name__ == "__main__":
    # module hyper-params (small, synthetic)
    n_embedding_channels = 15          # +1 inside the module forward -> 16
    C = n_embedding_channels + 1
    n_edge_features_in = 16
    n_edge_classes = 1                 # forward's concat of sampled_action implies 1
    exp_steps = 4
    p_sigma = 0.1
    E = 64                             # number of graph edges

    key = jax.random.PRNGKey(0)
    k_par, k_ef, k_e1d, k_act, k_samp = jax.random.split(key, 5)

    params = init_params(k_par, C, n_edge_features_in, n_edge_classes)
    edge_features = jax.random.normal(k_ef, (E, C), jnp.float32)
    edge_features_1d = jax.random.normal(k_e1d, (E, n_edge_features_in), jnp.float32)
    action_behav = jax.random.uniform(k_act, (E,), jnp.float32)

    outs = forward(edge_features, edge_features_1d, action_behav, params,
                   exp_steps=exp_steps, p_sigma=p_sigma, key=k_samp)
    outs = jax.block_until_ready(outs)
    p, q, v, a, sampled_action, q_prime = outs

    # shape / sanity checks
    assert p.shape == (E,) and q.shape == (E,) and q_prime.shape == (E,)
    assert bool(jnp.all(jnp.isfinite(q))) and bool(jnp.all((p >= 0) & (p <= 1)))
    assert bool(jnp.all((sampled_action >= 0) & (sampled_action <= 1)))

    # reference check of the deterministic heads against the un-fused torch math
    r = params["raw"]
    x1 = jnp.concatenate([edge_features, edge_features_1d], axis=-1)
    ref_p = jax.nn.sigmoid((x1 @ r["wp1"].T + r["bp1"]) @ r["wp2"].T + r["bp2"])[:, 0]
    ref_v = ((x1 @ r["wv1"].T + r["bv1"]) @ r["wv2"].T + r["bv2"])[:, 0]
    xa = jnp.concatenate([x1, action_behav[:, None]], axis=-1)
    ref_a = ((xa @ r["wa1"].T + r["ba1"]) @ r["wa2"].T + r["ba2"])[:, 0]
    assert bool(jnp.allclose(p, ref_p, rtol=2e-2, atol=2e-2))
    assert bool(jnp.allclose(v, ref_v, rtol=2e-2, atol=2e-2))
    assert bool(jnp.allclose(a, ref_a, rtol=2e-2, atol=2e-2))

    # internal dueling consistency: q - q' == (action_behav - s_last) * c_a
    c_a = params["ca"][0, 0]
    assert bool(jnp.allclose(q - q_prime,
                             (action_behav - sampled_action) * c_a,
                             rtol=1e-3, atol=1e-3))

    print("KERNEL_OK")
</pallas_src>

<mosaic_0001>
module attributes {stable_mosaic.version = 11 : i64} {
  func.func @_head_kernel(%arg0: i32, %arg1: memref<32x33xf32, #tpu.memory_space<vmem>>, %arg2: memref<33x128xf32, #tpu.memory_space<vmem>>, %arg3: memref<1x128xf32, #tpu.memory_space<vmem>>, %arg4: memref<32x128xf32, #tpu.memory_space<vmem>>) attributes {dimension_semantics = [#tpu.dimension_semantics<parallel>], iteration_bounds = array<i64: 2>, scalar_prefetch = 0 : i64, scratch_operands = 0 : i64, tpu.core_type = #tpu.core_type<tc>, window_params = [{transform_indices = @transform_0, window_bounds = array<i64: 32, 33>}, {pipeline_mode = #tpu.pipeline_mode<synchronous>, transform_indices = @transform_1, window_bounds = array<i64: 33, 128>}, {pipeline_mode = #tpu.pipeline_mode<synchronous>, transform_indices = @transform_2, window_bounds = array<i64: 1, 128>}, {transform_indices = @transform_3, window_bounds = array<i64: 32, 128>}]} {
    %c0 = arith.constant 0 : index
    %c0_0 = arith.constant 0 : index
    %0 = vector.load %arg1[%c0, %c0_0] : memref<32x33xf32, #tpu.memory_space<vmem>>, vector<32x33xf32>
    %c0_1 = arith.constant 0 : index
    %c0_2 = arith.constant 0 : index
    %1 = vector.load %arg2[%c0_1, %c0_2] : memref<33x128xf32, #tpu.memory_space<vmem>>, vector<33x128xf32>
    %cst = arith.constant dense<0.000000e+00> : vector<32x128xf32>
    %2 = tpu.matmul %0, %1, %cst {dimension_numbers = #tpu.dot_dimension_numbers<[1], [0], [0], [1], [0, 0, 1, 1], [], []>} : vector<32x33xf32>, vector<33x128xf32>, vector<32x128xf32> -> vector<32x128xf32>
    %c0_3 = arith.constant 0 : index
    %c0_4 = arith.constant 0 : index
    %3 = vector.load %arg3[%c0_3, %c0_4] : memref<1x128xf32, #tpu.memory_space<vmem>>, vector<1x128xf32>
    %4 = vector.broadcast %3 : vector<1x128xf32> to vector<32x128xf32>
    %5 = arith.addf %2, %4 : vector<32x128xf32>
    %6 = tpu.iota {dimensions = array<i32: 1>} : vector<32x128xi32>
    %c1_i32 = arith.constant 1 : i32
    %7 = vector.broadcast %c1_i32 : i32 to vector<32x128xi32>
    %8 = arith.cmpi slt, %6, %7 : vector<32x128xi32>
    %9 = arith.negf %5 : vector<32x128xf32>
    %10 = math.exp %9 : vector<32x128xf32>
    %cst_5 = arith.constant 1.000000e+00 : f32
    %11 = vector.broadcast %cst_5 : f32 to vector<32x128xf32>
    %12 = arith.addf %11, %10 : vector<32x128xf32>
    %13 = arith.divf %11, %12 : vector<32x128xf32>
    %14 = arith.select %8, %13, %5 : vector<32x128xi1>, vector<32x128xf32>
    %c0_6 = arith.constant 0 : index
    %c0_7 = arith.constant 0 : index
    %15 = vector.load %arg4[%c0_6, %c0_7] : memref<32x128xf32, #tpu.memory_space<vmem>>, vector<32x128xf32>
    tpu.vector_store %arg4[%c0_6, %c0_7], %14 {strides = array<i32>} : memref<32x128xf32, #tpu.memory_space<vmem>>, vector<32x128xf32>,
    return
  }
  func.func @transform_0(%arg0: i32) -> (i32, i32) {
    %c0_i32 = arith.constant 0 : i32
    %c0_i32_0 = arith.constant 0 : i32
    return %arg0, %c0_i32 : i32, i32
  }
  func.func @transform_1(%arg0: i32) -> (i32, i32) {
    %c0_i32 = arith.constant 0 : i32
    %c0_i32_0 = arith.constant 0 : i32
    %c0_i32_1 = arith.constant 0 : i32
    return %c0_i32, %c0_i32_0 : i32, i32
  }
  func.func @transform_2(%arg0: i32) -> (i32, i32) {
    %c0_i32 = arith.constant 0 : i32
    %c0_i32_0 = arith.constant 0 : i32
    %c0_i32_1 = arith.constant 0 : i32
    return %c0_i32, %c0_i32_0 : i32, i32
  }
  func.func @transform_3(%arg0: i32) -> (i32, i32) {
    %c0_i32 = arith.constant 0 : i32
    %c0_i32_0 = arith.constant 0 : i32
    return %arg0, %c0_i32 : i32, i32
  }
}

</mosaic_0001>

<llo_original>
// kernel: tpu_custom_call.1
$region0: #{tpu_custom_call.1}
  #allocation0 [shape = 'u32[]', space=smem, size = 0x4, offset = 0x4, fixed_abs, tag = 'smem constant byte address 0x4 - core index']
  #allocation1 [shape = 'u32[72,128]{1,0:T(1,128)}', space=vmem, size = 0x9000, scoped, tag = 'internal scratch']
  %s0 = inlined_call_operand.vmem [shape: f32[64,33], index: 0, kind: input, shape index: {}]
  %s1 = inlined_call_operand.vmem [shape: f32[33,128], index: 1, kind: input, shape index: {}]
  %s2 = inlined_call_operand.vmem [shape: f32[1,128], index: 2, kind: input, shape index: {}]
  %s3 = inlined_call_operand.hbm [shape: f32[64,128], index: 3, kind: output, shape index: {}]
  %s4 = sld [smem:[#allocation0]]
  $region45: #{tpu_custom_call.1} parent=0
    _
  %s6 = ssub.s32 1, %s4
  %s7 = scalar_select 0, %s6, %s4
  $region1: #{tpu_custom_call.1} parent=0
    #allocation2 [shape = 'u8[32768]{0}', space=vmem, size = 0x8000, scoped, tag = 'output window, operand 0']
    #allocation3 [shape = 's32[2]{0}', space=sflag, size = 0x8, scoped, tag = 'scoped memory for tpu_custom_call.1']
    %8 = vsyncpa [#allocation3], 0
    %s9 = scalar_lea.sflag [#allocation3], 1
    %10 = vsyncpa %s9, 0
    loop: start=0, step=1, limit=4
    $region2: #{tpu_custom_call.1} parent=1 // loop_pre_header
      _
    $region3: #{tpu_custom_call.1} parent=1 // loop_header
      %s12 = sphi 0, %s16
      %p13 = scmp.ge.s32.totalorder %s12, 4
      %s22 = sphi 0, %s24
      %s25 = sphi 0, %s22
      %s26 = sphi 0, %s25
      %s42 = sphi 0, %s26
      %s46 = sphi 0, %s46
      %s48 = sphi 0, %s46
      %s49 = sphi 0, %s48
      %s63 = sphi 0, %s49
      %s67 = sphi 0, %s67
      %s69 = sphi 0, %s67
      %s70 = sphi 0, %s69
      %s84 = sphi 0, %s70
      %s90 = sphi 0, %s92
      %s93 = sphi 0, %s90
      %s94 = sphi 0, %s93
      %s110 = sphi 0, %s94
    $region4: #{tpu_custom_call.1} parent=1 // loop_header_branch
      %15 = sbr.rel (%p13) target = $region8
    $region5: #{tpu_custom_call.1} parent=1 // loop_body
      %s17 = ssub.s32 %s12, 1
      %s18 = ssub.s32 %s12, 2
      %s19 = sadd.s32 %s12, 1
      %s20 = ssub.s32 %s12, %s19
      %p21 = scmp.eq.s32.totalorder %s20, 0
      %s23 = sadd.s32 %s22, 1
      %s24 = scalar_select %p21, %s22, %s23
      %p27 = pneg %p21
      %p28 = scmp.eq.s32.totalorder %s12, 1
      %p29 = por %p27, %p28
      %p30 = scmp.ne.s32.totalorder %s22, %s25
      %p31 = scmp.eq.s32.totalorder %s12, 0
      %p32 = por %p30, %p31
      %p33 = scmp.ne.s32.totalorder %s22, %s25
      %p34 = scmp.eq.s32.totalorder %s17, 1
      %p35 = por %p33, %p34
      %p36 = scmp.ne.s32.totalorder %s25, %s26
      %p37 = scmp.eq.s32.totalorder %s17, 0
      %p38 = por %p36, %p37
      %p39 = scmp.ne.s32.totalorder %s25, %s26
      %p40 = scmp.eq.s32.totalorder %s18, 1
      %p41 = por %p39, %p40
      %p43 = scmp.ne.s32.totalorder %s26, %s42
      %p44 = scmp.eq.s32.totalorder %s18, 0
      %p45 = por %p43, %p44
      %s47 = sadd.s32 %s46, 1
      %p50 = scmp.eq.s32.totalorder %s12, 1
      %p51 = scmp.ne.s32.totalorder %s46, %s48
      %p52 = scmp.eq.s32.totalorder %s12, 0
      %p53 = por %p51, %p52
      %p54 = scmp.ne.s32.totalorder %s46, %s48
      %p55 = scmp.eq.s32.totalorder %s17, 1
      %p56 = por %p54, %p55
      %p57 = scmp.ne.s32.totalorder %s48, %s49
      %p58 = scmp.eq.s32.totalorder %s17, 0
      %p59 = por %p57, %p58
      %p60 = scmp.ne.s32.totalorder %s48, %s49
      %p61 = scmp.eq.s32.totalorder %s18, 1
      %p62 = por %p60, %p61
      %p64 = scmp.ne.s32.totalorder %s49, %s63
      %p65 = scmp.eq.s32.totalorder %s18, 0
      %p66 = por %p64, %p65
      %s68 = sadd.s32 %s67, 1
      %p71 = scmp.eq.s32.totalorder %s12, 1
      %p72 = scmp.ne.s32.totalorder %s67, %s69
      %p73 = scmp.eq.s32.totalorder %s12, 0
      %p74 = por %p72, %p73
      %p75 = scmp.ne.s32.totalorder %s67, %s69
      %p76 = scmp.eq.s32.totalorder %s17, 1
      %p77 = por %p75, %p76
      %p78 = scmp.ne.s32.totalorder %s69, %s70
      %p79 = scmp.eq.s32.totalorder %s17, 0
      %p80 = por %p78, %p79
      %p81 = scmp.ne.s32.totalorder %s69, %s70
      %p82 = scmp.eq.s32.totalorder %s18, 1
      %p83 = por %p81, %p82
      %p85 = scmp.ne.s32.totalorder %s70, %s84
      %p86 = scmp.eq.s32.totalorder %s18, 0
      %p87 = por %p85, %p86
      %s88 = ssub.s32 %s12, %s19
      %p89 = scmp.eq.s32.totalorder %s88, 0
      %s91 = sadd.s32 %s90, 1
      %s92 = scalar_select %p89, %s90, %s91
      %p95 = pneg %p89
      %p96 = scmp.eq.s32.totalorder %s12, 1
      %p97 = por %p95, %p96
      %p98 = scmp.ne.s32.totalorder %s90, %s93
      %p99 = scmp.eq.s32.totalorder %s12, 0
      %p100 = por %p98, %p99
      %p101 = scmp.ne.s32.totalorder %s90, %s93
      %p102 = scmp.eq.s32.totalorder %s17, 1
      %p103 = por %p101, %p102
      %p104 = scmp.ne.s32.totalorder %s93, %s94
      %p105 = scmp.eq.s32.totalorder %s17, 0
      %p106 = por %p104, %p105
      %p107 = scmp.ne.s32.totalorder %s93, %s94
      %p108 = scmp.eq.s32.totalorder %s18, 1
      %p109 = por %p107, %p108
      %p111 = scmp.ne.s32.totalorder %s94, %s110
      %p112 = scmp.eq.s32.totalorder %s18, 0
      %p113 = por %p111, %p112
      %p114 = scmp.le.s32.totalorder 1, %s12
      %p115 = scmp.lt.s32.totalorder %s12, 3
      %p116 = pnand %p114, %p115
      %p117 = pneg %p116
      // Predicated region
      $region9: #{tpu_custom_call.1} parent=5 // pred_check
        _
      $region10: #{tpu_custom_call.1} parent=5 // pred_check_branch
        %119 = sbr.rel (%p116) target = $region12
      $region11: #{tpu_custom_call.1} parent=5 // pred_region
        %s120 = ssub.s32 %s12, 1
        // Predicated region
        $region13: #{tpu_custom_call.1} parent=11 // pred_check
          %p121 = pneg %p59
        $region14: #{tpu_custom_call.1} parent=11 // pred_check_branch
          %123 = sbr.rel (%p121) target = $region16
        $region15: #{tpu_custom_call.1} parent=11 // pred_region
          _
        $region16: #{tpu_custom_call.1} parent=11 // pred_fallthru
          _
        // Predicated region
        $region17: #{tpu_custom_call.1} parent=11 // pred_check
          %p124 = pneg %p80
        $region18: #{tpu_custom_call.1} parent=11 // pred_check_branch
          %126 = sbr.rel (%p124) target = $region20
        $region19: #{tpu_custom_call.1} parent=11 // pred_region
          _
        $region20: #{tpu_custom_call.1} parent=11 // pred_fallthru
          _
      $region12: #{tpu_custom_call.1} parent=5 // pred_fallthru
        _
      %p127 = scmp.lt.s32.totalorder %s12, 2
      // Predicated region
      $region21: #{tpu_custom_call.1} parent=5 // pred_check
        %p128 = pneg %p127
      $region22: #{tpu_custom_call.1} parent=5 // pred_check_branch
        %130 = sbr.rel (%p128) target = $region24
      $region23: #{tpu_custom_call.1} parent=5 // pred_region
        // Predicated region
        $region25: #{tpu_custom_call.1} parent=23 // pred_check
          %p131 = pneg %p32
        $region26: #{tpu_custom_call.1} parent=23 // pred_check_branch
          %133 = sbr.rel (%p131) target = $region28
        $region27: #{tpu_custom_call.1} parent=23 // pred_region
          %s134 = smul.u32 4, %s12
          %p135 = scmp.lt.s32.totalorder %s134, 7
          %s136 = scalar_select %p135, %s134, 7
          %s137 = smul.addr %s136, 8
          %s138 = scalar_lea.vmem %s0, %s137
          %s139 = smul.u32 4, %s12
        $region28: #{tpu_custom_call.1} parent=23 // pred_fallthru
          _
      $region24: #{tpu_custom_call.1} parent=5 // pred_fallthru
        _
      %p140 = scmp.le.s32.totalorder 1, %s12
      %p141 = scmp.lt.s32.totalorder %s12, 3
      %p142 = pnand %p140, %p141
      %p143 = pneg %p142
      // Predicated region
      $region29: #{tpu_custom_call.1} parent=5 // pred_check
        _
      $region30: #{tpu_custom_call.1} parent=5 // pred_check_branch
        %145 = sbr.rel (%p142) target = $region32
      $region31: #{tpu_custom_call.1} parent=5 // pred_region
        %s146 = ssub.s32 %s12, 1
        %s147 = smul.u32 4, %s17
        %p148 = scmp.lt.s32.totalorder %s147, 7
        %s149 = scalar_select %p148, %s147, 7
        %s150 = smul.addr %s149, 8
        %s151 = scalar_lea.vmem %s0, %s150
        %p152 = pneg %p38
        %p153 = pneg %p35
        %p154 = pneg %p59
        %p155 = pneg %p56
        %p156 = pneg %p80
        %p157 = pneg %p77
        %p158 = pneg %p106
        %p159 = pneg %p103
        %s160 = sand.u32 %s93, 1
        %s161 = scalar_lea.sflag [#allocation3], %s160
        %s162 = sand.u32 %s93, 1
        %s163 = smul.addr %s162, 32
        %s164 = scalar_lea.vmem [#allocation2], %s163
        %s165 = smul.u32 4, %s17
        %p166 = scmp.lt.s32.totalorder %s165, 7
        %s167 = scalar_select %p166, %s165, 7
        %s168 = smul.addr %s167, 8
        %s169 = scalar_lea.vmem %s0, %s168
        %s170 = smul.u32 4, %s17
        %s171 = smul.u32 4, %s17
        %v172 = vld [vmem:[%s169] sm:$0xff]
        %v173 = vld [vmem:[%s169 + $0x8] sm:$0xff]
        %v174 = vld [vmem:[%s169 + $0x10] sm:$0xff]
        %v175 = vld [vmem:[%s169 + $0x18] sm:$0xff]
        %v176 = vld [vmem:[%s1] sm:$0xff]
        %v177 = vld [vmem:[%s1 + $0x8] sm:$0xff]
        %v178 = vld [vmem:[%s1 + $0x10] sm:$0xff]
        %v179 = vld [vmem:[%s1 + $0x18] sm:$0xff]
        %v180 = vld [vmem:[%s1 + $0x20] sm:$0x1]
        %v181 = vld [vmem:[%s2] sm:$0x1]
        %v183 = vperm.slane %v181, 0
        %vm185 = vcmask 269312
        %v187 = vsel %vm185, %v172, 0
        %v190 = vsel %vm185, %v173, 0
        %v193 = vsel %vm185, %v174, 0
        %v196 = vsel %vm185, %v175, 0
        %vm198 = vcmask 1040384
        %v200 = vsel %vm198, %v180, 0
        %202 = vmatpush.msra.mxu0 0.0
        %203 = vmatpush.msra.mxu0 0.0
        %204 = vmatpush.msra.mxu0 0.0
        %205 = vmatpush.msra.mxu0 0.0
        %206 = vmatpush.msra.mxu0 0.0
        %207 = vmatpush.msra.mxu0 0.0
        %208 = vmatpush.msra.mxu0 0.0
        %209 = vmatpush.msra.mxu0 0.0
        %210 = vmatpush.msra.mxu0 0.0
        %211 = vmatpush.msra.mxu0 0.0
        %212 = vmatpush.msra.mxu0 0.0
        %213 = vmatpush.msra.mxu0 %v200
        %214 = vmatpush.msra.mxu0 %v179
        %215 = vmatpush.msra.mxu0 %v178
        %216 = vmatpush.msra.mxu0 %v177
        %217 = vmatpush.msra.mxu0 %v176
        %218 = vmatmul.f32.gmra.mxu0 %v187
        %v219 = vpop.f32.mrf.mxu0
        %v220 = vadd.f32 %v183, %v219
        %221 = vmatmul.f32.gmra.mxu0 %v190
        %v222 = vpop.f32.mrf.mxu0
        %v223 = vadd.f32 %v183, %v222
        %224 = vmatmul.f32.gmra.mxu0 %v193
        %v225 = vpop.f32.mrf.mxu0
        %v226 = vadd.f32 %v183, %v225
        %227 = vmatmul.f32.gmra.mxu0 %v196
        %v228 = vpop.f32.mrf.mxu0
        %v229 = vadd.f32 %v183, %v228
        %230 = vdwg.mxu0
        %v231 = vlaneseq
        %v232 = vand.u32 %v231, 127
        %vm233 = vcmp.lt.s32.totalorder %v232, 1
        %v234 = vxor.u32 %v220, 2147483648
        %v235 = vxor.u32 %v223, 2147483648
        %v236 = vxor.u32 %v226, 2147483648
        %v237 = vxor.u32 %v229, 2147483648
        %v238 = vmul.f32 %v234, 1.442695
        %v239 = vpow.pop %v238
        %v240 = vmul.f32 %v235, 1.442695
        %v241 = vpow.pop %v240
        %v242 = vmul.f32 %v236, 1.442695
        %v243 = vpow.pop %v242
        %v244 = vmul.f32 %v237, 1.442695
        %v245 = vpow.pop %v244
        %v246 = vadd.f32 %v239, 1.0
        %v247 = vadd.f32 %v241, 1.0
        %v248 = vadd.f32 %v243, 1.0
        %v249 = vadd.f32 %v245, 1.0
        %v250 = vrcp.pop %v246
        %v251 = vmul.f32 %v246, %v250
        %v252 = vsub.f32 1.0, %v251
        %v253 = vmul.f32 %v250, %v252
        %v254 = vadd.f32 %v250, %v253
        %vm255 = vweird.f32 %v246
        %vm256 = vweird.f32 %v250
        %vm257 = vmor %vm255, %vm256
        %v258 = vsel %vm257, %v250, %v254
        %v259 = vand.u32 2147483647, %v246
        %vm260 = vcmp.eq.f32.partialorder %v259, 8.507059e+37
        %v261 = vand.u32 %v246, 2147483648
        %v262 = vor.u32 1.1754944e-38, %v261
        %v263 = vsel %vm260, %v262, %v258
        %v264 = vmul.f32 1.0, %v263
        %v265 = vrcp.pop %v247
        %v266 = vmul.f32 %v247, %v265
        %v267 = vsub.f32 1.0, %v266
        %v268 = vmul.f32 %v265, %v267
        %v269 = vadd.f32 %v265, %v268
        %vm270 = vweird.f32 %v247
        %vm271 = vweird.f32 %v265
        %vm272 = vmor %vm270, %vm271
        %v273 = vsel %vm272, %v265, %v269
        %v274 = vand.u32 2147483647, %v247
        %vm275 = vcmp.eq.f32.partialorder %v274, 8.507059e+37
        %v276 = vand.u32 %v247, 2147483648
        %v277 = vor.u32 1.1754944e-38, %v276
        %v278 = vsel %vm275, %v277, %v273
        %v279 = vmul.f32 1.0, %v278
        %v280 = vrcp.pop %v248
        %v281 = vmul.f32 %v248, %v280
        %v282 = vsub.f32 1.0, %v281
        %v283 = vmul.f32 %v280, %v282
        %v284 = vadd.f32 %v280, %v283
        %vm285 = vweird.f32 %v248
        %vm286 = vweird.f32 %v280
        %vm287 = vmor %vm285, %vm286
        %v288 = vsel %vm287, %v280, %v284
        %v289 = vand.u32 2147483647, %v248
        %vm290 = vcmp.eq.f32.partialorder %v289, 8.507059e+37
        %v291 = vand.u32 %v248, 2147483648
        %v292 = vor.u32 1.1754944e-38, %v291
        %v293 = vsel %vm290, %v292, %v288
        %v294 = vmul.f32 1.0, %v293
        %v295 = vrcp.pop %v249
        %v296 = vmul.f32 %v249, %v295
        %v297 = vsub.f32 1.0, %v296
        %v298 = vmul.f32 %v295, %v297
        %v299 = vadd.f32 %v295, %v298
        %vm300 = vweird.f32 %v249
        %vm301 = vweird.f32 %v295
        %vm302 = vmor %vm300, %vm301
        %v303 = vsel %vm302, %v295, %v299
        %v304 = vand.u32 2147483647, %v249
        %vm305 = vcmp.eq.f32.partialorder %v304, 8.507059e+37
        %v306 = vand.u32 %v249, 2147483648
        %v307 = vor.u32 1.1754944e-38, %v306
        %v308 = vsel %vm305, %v307, %v303
        %v309 = vmul.f32 1.0, %v308
        %v310 = vsel %vm233, %v264, %v220
        %v311 = vsel %vm233, %v279, %v223
        %v312 = vsel %vm233, %v294, %v226
        %v313 = vsel %vm233, %v309, %v229
        %314 = vst [vmem:[%s164] sm:$0xff] %v310
        %315 = vst [vmem:[%s164 + $0x8] sm:$0xff] %v311
        %316 = vst [vmem:[%s164 + $0x10] sm:$0xff] %v312
        %317 = vst [vmem:[%s164 + $0x18] sm:$0xff] %v313
        %s318 = sand.u32 %s93, 1
        %s319 = scalar_lea.sflag [#allocation3], %s318
        %s320 = sand.u32 %s93, 1
        %s321 = smul.addr %s320, 32
        %s322 = scalar_lea.vmem [#allocation2], %s321
        // Predicated region
        $region33: #{tpu_custom_call.1} parent=31 // pred_check
          %p323 = pneg %p103
        $region34: #{tpu_custom_call.1} parent=31 // pred_check_branch
          %325 = sbr.rel (%p323) target = $region36
        $region35: #{tpu_custom_call.1} parent=31 // pred_region
          %s326 = smul.u32 4, %s17
          %328 = vsyncadd %s319, 0
          %s329 = smul.addr %s326, 8
          %s330 = scalar_lea.hbm %s3, %s329
          %s331 = sshll.u32 %s322, 4
          %s332 = int_to_ptr.vmem [resolvable:$true] %s331
          %s333 = sshll.u32 %s330, 4
          %s334 = int_to_ptr.hbm [resolvable:$true] %s333
          %339 = dma.vmem_to_hbm [thread:$0]  %s332, 512, %s334, %s319, 128, 128, 8
        $region36: #{tpu_custom_call.1} parent=31 // pred_fallthru
          _
      $region32: #{tpu_custom_call.1} parent=5 // pred_fallthru
        _
      %p340 = scmp.le.s32.totalorder 2, %s12
      // Predicated region
      $region37: #{tpu_custom_call.1} parent=5 // pred_check
        %p341 = pneg %p340
      $region38: #{tpu_custom_call.1} parent=5 // pred_check_branch
        %343 = sbr.rel (%p341) target = $region40
      $region39: #{tpu_custom_call.1} parent=5 // pred_region
        %s344 = ssub.s32 %s12, 2
        // Predicated region
        $region41: #{tpu_custom_call.1} parent=39 // pred_check
          %p345 = pneg %p109
        $region42: #{tpu_custom_call.1} parent=39 // pred_check_branch
          %347 = sbr.rel (%p345) target = $region44
        $region43: #{tpu_custom_call.1} parent=39 // pred_region
          %s348 = sand.u32 %s94, 1
          %s349 = scalar_lea.sflag [#allocation3], %s348
          %s350 = sand.u32 %s94, 1
          %s351 = smul.addr %s350, 32
          %s352 = scalar_lea.vmem [#allocation2], %s351
          %354 = dma.done %s349, 512
        $region44: #{tpu_custom_call.1} parent=39 // pred_fallthru
          _
      $region40: #{tpu_custom_call.1} parent=5 // pred_fallthru
        _
    $region6: #{tpu_custom_call.1} parent=1 // loop_footer
      %s16 = sadd.s32 1, %s12
    $region7: #{tpu_custom_call.1} parent=1 // loop_footer_branch
      %11 = sbr.rel target = $region3
    $region8: #{tpu_custom_call.1} parent=1 // loop_exit
      _
    %355 = vsyncpa [#allocation3], 1
    %s356 = scalar_lea.sflag [#allocation3], 1
    %357 = vsyncpa %s356, 1

</llo_original>
